<compile_context>
chip_gen: v7x
topology: tpu7x:2x2x1
jax: 0.10.0
libtpu: 0.0.40
codegen_flags: <defaults>
</compile_context>

<pallas_src>
import functools

import jax
import jax.numpy as jnp
from jax.experimental import pallas as pl
from jax.experimental.pallas import tpu as pltpu

NUM_CLASSES = 41
IGNORE_INDEX = 255


def _round_up(x, m):
    return ((x + m - 1) // m) * m


def _resolve_parts(batch, n_blocks, requested):
    """Pick how many grid partitions to put on the spatial axis."""
    if requested is not None:
        return max(1, min(requested, n_blocks))
    try:
        kind = jax.devices()[0].device_kind.lower()
    except Exception:  # pragma: no cover - defensive
        kind = ""
    multi_tc = ("v7" in kind) or ("7x" in kind) or ("v4" in kind) or ("v3" in kind)
    # Single-TC chips (v5e / v6e) never benefit from the extra axis; multi-TC
    # chips only need it when the batch axis alone cannot feed both cores.
    if multi_tc and (batch % 2 == 1) and n_blocks >= 2:
        return 2
    return 1


def _ce_kernel(logits_ref, labels_ref, weight_ref, acc_ref, *,
               n_inner, n_blocks, tile, hw):
    # logits_ref: (C, T) native dtype   labels_ref: (1, T) int32
    # weight_ref: (C, 1) f32            acc_ref:   (2, T) f32 accumulator
    #   acc row 0 = running weighted-loss sum per lane
    #   acc row 1 = running weight sum per lane
    p = pl.program_id(1)
    i = pl.program_id(2)

    @pl.when(i == 0)
    def _():
        acc_ref[...] = jnp.zeros_like(acc_ref)

    x = logits_ref[...].astype(jnp.float32)          # (C, T)
    y = labels_ref[...]                              # (1, T) int32
    w = weight_ref[...].astype(jnp.float32)          # (C, 1)

    # numerically stable log-sum-exp over the class (sublane) axis
    m = jnp.max(x, axis=0, keepdims=True)                                  # (1, T)
    lse = m + jnp.log(jnp.sum(jnp.exp(x - m), axis=0, keepdims=True))      # (1, T)

    # gather logit & class-weight at the target class with one boolean one-hot
    cls = jax.lax.broadcasted_iota(jnp.int32, x.shape, 0)                  # (C, T)
    onehot = cls == y                                                      # (C, T)
    x_y = jnp.sum(jnp.where(onehot, x, 0.0), axis=0, keepdims=True)        # (1, T) = x[y]
    w_y = jnp.sum(jnp.where(onehot, w, 0.0), axis=0, keepdims=True)        # (1, T) = w[y]

    # validity: real (non-phantom, in-range) lane and label != ignore_index.
    # Keep where-based masking: garbage lanes may hold inf/NaN intermediates.
    blk_raw = p * n_inner + i
    blk = jnp.minimum(blk_raw, n_blocks - 1)
    lane = jax.lax.broadcasted_iota(jnp.int32, (1, tile), 1)
    in_range = (blk * tile + lane < hw) & (blk_raw < n_blocks)
    valid = in_range & (y != IGNORE_INDEX)                                 # (1, T)

    loss_row = jnp.where(valid, w_y * (lse - x_y), 0.0)                    # (1, T)
    wsum_row = jnp.where(valid, w_y, 0.0)                                  # (1, T)
    # single full-block (unmasked) accumulator update
    acc_ref[...] += jnp.concatenate([loss_row, wsum_row], axis=0)          # (2, T)


@functools.partial(jax.jit, static_argnames=("tile_lanes", "num_parts"))
def seg_cross_entropy_loss(pred, label, weight, *, tile_lanes=8192, num_parts=None):
    """pred: (N, C, H, W); label: (N, 3*c, Hl, Wl) (first chunk of 3 is the GT);
    weight: (C,) class weights.  Returns scalar weighted CE (ignore_index=255)."""
    N, C, H, W = pred.shape
    HW = H * W

    # --- glue (plain JAX): chunk label, nearest-resize to pred's spatial size ---
    # Integer nearest gather (floor(i*in/out), PyTorch legacy mode='nearest');
    # avoids a float round-trip and chained gathers.
    c_lab = max(label.shape[1] // 3, 1)
    lab = label[:, :c_lab]
    in_h, in_w = lab.shape[-2], lab.shape[-1]
    hi = jnp.floor(jnp.arange(H) * (in_h / H)).astype(jnp.int32)
    wi = jnp.floor(jnp.arange(W) * (in_w / W)).astype(jnp.int32)
    gt = lab[:, :, hi[:, None], wi[None, :]]                 # (N, 1, H, W) nearest
    gt = gt.astype(jnp.int32).reshape(N, 1, HW)              # lane order = h*W + w

    # class-major, lane-dense view of the logits: a *free* reshape of NCHW.
    # Keep native dtype (bf16 logits halve HBM traffic; kernel upcasts to f32).
    logits = pred.reshape(N, C, HW)
    w2d = weight.astype(jnp.float32).reshape(C, 1)

    # tiling over the spatial (lane) axis
    tile = min(tile_lanes, _round_up(HW, 128))
    n_blocks = -(-HW // tile)                                # cdiv
    parts = _resolve_parts(N, n_blocks, num_parts)           # generation-aware
    n_inner = _round_up(n_blocks, parts) // parts
    grid = (N, parts, n_inner)

    def blk_idx(p, i):
        # clamp so phantom blocks of the last partition never DMA out of bounds
        return jnp.minimum(p * n_inner + i, n_blocks - 1)

    kern = functools.partial(_ce_kernel, n_inner=n_inner, n_blocks=n_blocks,
                             tile=tile, hw=HW)

    itemsize = jnp.dtype(pred.dtype).itemsize
    cost = pl.CostEstimate(
        flops=10 * N * HW * C,
        transcendentals=N * HW * (C + 1),
        bytes_accessed=N * HW * C * itemsize + N * HW * 4,
    )

    acc = pl.pallas_call(
        kern,
        out_shape=jax.ShapeDtypeStruct((N * parts, 2, tile), jnp.float32),
        grid_spec=pltpu.PrefetchScalarGridSpec(
            num_scalar_prefetch=0,
            grid=grid,
            in_specs=[
                pl.BlockSpec((None, C, tile),
                             lambda n, p, i: (n, 0, blk_idx(p, i))),
                pl.BlockSpec((None, 1, tile),
                             lambda n, p, i: (n, 0, blk_idx(p, i))),
                pl.BlockSpec((C, 1), lambda n, p, i: (0, 0)),
            ],
            out_specs=pl.BlockSpec((None, 2, tile),
                                   lambda n, p, i: (n * parts + p, 0, 0)),
        ),
        compiler_params=pltpu.CompilerParams(
            dimension_semantics=("parallel", "parallel", "arbitrary")),
        cost_estimate=cost,
    )(logits, gt, w2d)

    totals = jnp.sum(acc, axis=(0, 2))        # (2,): row0 = sum loss, row1 = sum w
    return (totals[0] / totals[1]).astype(jnp.float32)


def _reference_loss(pred, label, weight):
    """Plain-JAX reference of the PyTorch forward, for sanity checking."""
    N, C, H, W = pred.shape
    lab = label[:, : max(label.shape[1] // 3, 1)].astype(jnp.float32)
    in_h, in_w = lab.shape[-2], lab.shape[-1]
    hi = jnp.floor(jnp.arange(H) * (in_h / H)).astype(jnp.int32)
    wi = jnp.floor(jnp.arange(W) * (in_w / W)).astype(jnp.int32)
    gt = lab[:, :, hi, :][:, :, :, wi]
    gt = jnp.transpose(gt, (0, 2, 3, 1)).reshape(-1).astype(jnp.int32)
    logits = jnp.transpose(pred, (0, 2, 3, 1)).reshape(-1, C).astype(jnp.float32)
    logp = jax.nn.log_softmax(logits, axis=-1)
    valid = gt != IGNORE_INDEX
    safe_gt = jnp.where(valid, gt, 0)
    nll = -jnp.take_along_axis(logp, safe_gt[:, None], axis=-1)[:, 0]
    w_y = weight[safe_gt]
    num = jnp.sum(jnp.where(valid, w_y * nll, 0.0))
    den = jnp.sum(jnp.where(valid, w_y, 0.0))
    return num / den


if __name__ == "__main__":
    key = jax.random.PRNGKey(0)
    k1, k2, k3 = jax.random.split(key, 3)

    N, C, H, W = 2, NUM_CLASSES, 16, 16
    pred = jax.random.normal(k1, (N, C, H, W), dtype=jnp.float32)

    # label: NCHW with 3 channels (module chunks dim=1 into 3, keeps the first);
    # coarser spatial size to exercise the nearest interpolation.
    lab_classes = jax.random.randint(k2, (N, 3, 32, 32), 0, NUM_CLASSES)
    ignore_mask = jax.random.bernoulli(k3, 0.05, (N, 3, 32, 32))
    label = jnp.where(ignore_mask, IGNORE_INDEX, lab_classes).astype(jnp.int32)

    # NYU weights: ones, weight[0] = 0.1 (deterministic init, no file load)
    weight = jnp.ones((NUM_CLASSES,), dtype=jnp.float32).at[0].set(0.1)

    loss = seg_cross_entropy_loss(pred, label, weight)
    loss = jax.block_until_ready(loss)

    ref = jax.block_until_ready(_reference_loss(pred, label, weight))
    assert jnp.allclose(loss, ref, rtol=1e-4, atol=1e-5), (loss, ref)

    print("KERNEL_OK")
</pallas_src>

<mosaic_0001>
module attributes {stable_mosaic.version = 11 : i64} {
  func.func @_ce_kernel(%arg0: i32, %arg1: i32, %arg2: i32, %arg3: memref<1x41x256xf32, #tpu.memory_space<vmem>>, %arg4: memref<1x1x256xi32, #tpu.memory_space<vmem>>, %arg5: memref<41x1xf32, #tpu.memory_space<vmem>>, %arg6: memref<1x2x256xf32, #tpu.memory_space<vmem>>) attributes {dimension_semantics = [#tpu.dimension_semantics<parallel>, #tpu.dimension_semantics<parallel>, #tpu.dimension_semantics<arbitrary>], iteration_bounds = array<i64: 2, 1, 1>, scalar_prefetch = 0 : i64, scratch_operands = 0 : i64, tpu.core_type = #tpu.core_type<tc>, window_params = [{transform_indices = @transform_0, window_bounds = array<i64: 1, 41, 256>}, {transform_indices = @transform_1, window_bounds = array<i64: 1, 1, 256>}, {pipeline_mode = #tpu.pipeline_mode<synchronous>, transform_indices = @transform_2, window_bounds = array<i64: 41, 1>}, {transform_indices = @transform_3, window_bounds = array<i64: 1, 2, 256>}]} {
    %c0_i32 = arith.constant 0 : i32
    %0 = arith.cmpi eq, %arg2, %c0_i32 : i32
    %1 = arith.extui %0 : i1 to i32
    %c0_i32_0 = arith.constant 0 : i32
    %2 = arith.cmpi ne, %1, %c0_i32_0 : i32
    scf.if %2 {
      %cst_24 = arith.constant 0.000000e+00 : f32
      %58 = vector.broadcast %cst_24 : f32 to vector<2x256xf32>
      %c0_25 = arith.constant 0 : index
      %c0_26 = arith.constant 0 : index
      %c0_27 = arith.constant 0 : index
      %59 = vector.load %arg6[%c0_25, %c0_26, %c0_27] : memref<1x2x256xf32, #tpu.memory_space<vmem>>, vector<1x2x256xf32>
      %60 = vector.shape_cast %59 : vector<1x2x256xf32> to vector<2x256xf32>
      %61 = vector.shape_cast %58 : vector<2x256xf32> to vector<1x2x256xf32>
      tpu.vector_store %arg6[%c0_25, %c0_26, %c0_27], %61 {strides = array<i32>} : memref<1x2x256xf32, #tpu.memory_space<vmem>>, vector<1x2x256xf32>,
    } else {
    }
    %c0 = arith.constant 0 : index
    %c0_1 = arith.constant 0 : index
    %c0_2 = arith.constant 0 : index
    %3 = vector.load %arg3[%c0, %c0_1, %c0_2] : memref<1x41x256xf32, #tpu.memory_space<vmem>>, vector<1x41x256xf32>
    %4 = vector.shape_cast %3 : vector<1x41x256xf32> to vector<41x256xf32>
    %c0_3 = arith.constant 0 : index
    %c0_4 = arith.constant 0 : index
    %c0_5 = arith.constant 0 : index
    %5 = vector.load %arg4[%c0_3, %c0_4, %c0_5] : memref<1x1x256xi32, #tpu.memory_space<vmem>>, vector<1x1x256xi32>
    %6 = vector.shape_cast %5 : vector<1x1x256xi32> to vector<1x256xi32>
    %c0_6 = arith.constant 0 : index
    %c0_7 = arith.constant 0 : index
    %7 = vector.load %arg5[%c0_6, %c0_7] : memref<41x1xf32, #tpu.memory_space<vmem>>, vector<41x1xf32>
    %cst = arith.constant dense<0xFF800000> : vector<256xf32>
    %8 = vector.multi_reduction <maximumf>, %4, %cst [0] : vector<41x256xf32> to vector<256xf32>
    %9 = vector.shape_cast %8 : vector<256xf32> to vector<1x256xf32>
    %10 = vector.broadcast %9 : vector<1x256xf32> to vector<41x256xf32>
    %11 = arith.subf %4, %10 : vector<41x256xf32>
    %12 = math.exp %11 : vector<41x256xf32>
    %cst_8 = arith.constant dense<0.000000e+00> : vector<256xf32>
    %13 = vector.multi_reduction <add>, %12, %cst_8 [0] : vector<41x256xf32> to vector<256xf32>
    %14 = vector.shape_cast %13 : vector<256xf32> to vector<1x256xf32>
    %15 = math.log %14 : vector<1x256xf32>
    %16 = arith.addf %9, %15 : vector<1x256xf32>
    %17 = tpu.iota {dimensions = array<i32: 0>} : vector<41x256xi32>
    %18 = vector.broadcast %6 : vector<1x256xi32> to vector<41x256xi32>
    %19 = arith.cmpi eq, %17, %18 : vector<41x256xi32>
    %cst_9 = arith.constant 0.000000e+00 : f32
    %20 = vector.broadcast %cst_9 : f32 to vector<41x256xf32>
    %21 = arith.select %19, %4, %20 : vector<41x256xi1>, vector<41x256xf32>
    %cst_10 = arith.constant dense<0.000000e+00> : vector<256xf32>
    %22 = vector.multi_reduction <add>, %21, %cst_10 [0] : vector<41x256xf32> to vector<256xf32>
    %23 = vector.shape_cast %22 : vector<256xf32> to vector<1x256xf32>
    %cst_11 = arith.constant 0.000000e+00 : f32
    %24 = vector.shape_cast %7 : vector<41x1xf32> to vector<41x1xf32>
    %25 = vector.broadcast %24 : vector<41x1xf32> to vector<41x256xf32>
    %26 = vector.broadcast %cst_11 : f32 to vector<41x256xf32>
    %27 = arith.select %19, %25, %26 : vector<41x256xi1>, vector<41x256xf32>
    %cst_12 = arith.constant dense<0.000000e+00> : vector<256xf32>
    %28 = vector.multi_reduction <add>, %27, %cst_12 [0] : vector<41x256xf32> to vector<256xf32>
    %29 = vector.shape_cast %28 : vector<256xf32> to vector<1x256xf32>
    %c1_i32 = arith.constant 1 : i32
    %30 = arith.muli %arg1, %c1_i32 : i32
    %31 = arith.addi %30, %arg2 : i32
    %c0_i32_13 = arith.constant 0 : i32
    %32 = arith.minsi %31, %c0_i32_13 : i32
    %33 = tpu.iota {dimensions = array<i32: 1>} : vector<1x256xi32>
    %c256_i32 = arith.constant 256 : i32
    %34 = arith.muli %32, %c256_i32 : i32
    %35 = vector.broadcast %34 : i32 to vector<1x256xi32>
    %36 = arith.addi %35, %33 : vector<1x256xi32>
    %c256_i32_14 = arith.constant 256 : i32
    %37 = vector.broadcast %c256_i32_14 : i32 to vector<1x256xi32>
    %38 = arith.cmpi slt, %36, %37 : vector<1x256xi32>
    %c1_i32_15 = arith.constant 1 : i32
    %39 = arith.cmpi slt, %31, %c1_i32_15 : i32
    %40 = vector.broadcast %39 : i1 to vector<1x256xi1>
    %41 = arith.andi %38, %40 : vector<1x256xi1>
    %c255_i32 = arith.constant 255 : i32
    %42 = vector.broadcast %c255_i32 : i32 to vector<1x256xi32>
    %43 = arith.cmpi ne, %6, %42 : vector<1x256xi32>
    %44 = arith.andi %41, %43 : vector<1x256xi1>
    %45 = arith.subf %16, %23 : vector<1x256xf32>
    %46 = arith.mulf %29, %45 : vector<1x256xf32>
    %cst_16 = arith.constant 0.000000e+00 : f32
    %47 = vector.broadcast %cst_16 : f32 to vector<1x256xf32>
    %48 = arith.select %44, %46, %47 : vector<1x256xi1>, vector<1x256xf32>
    %cst_17 = arith.constant 0.000000e+00 : f32
    %49 = vector.broadcast %cst_17 : f32 to vector<1x256xf32>
    %50 = arith.select %44, %29, %49 : vector<1x256xi1>, vector<1x256xf32>
    %c0_18 = arith.constant 0 : index
    %c0_19 = arith.constant 0 : index
    %c0_20 = arith.constant 0 : index
    %51 = vector.load %arg6[%c0_18, %c0_19, %c0_20] : memref<1x2x256xf32, #tpu.memory_space<vmem>>, vector<1x2x256xf32>
    %52 = vector.shape_cast %51 : vector<1x2x256xf32> to vector<2x256xf32>
    %53 = tpu.concatenate %48, %50 in 0 : vector<1x256xf32>, vector<1x256xf32> -> vector<2x256xf32>
    %54 = arith.addf %52, %53 : vector<2x256xf32>
    %c0_21 = arith.constant 0 : index
    %c0_22 = arith.constant 0 : index
    %c0_23 = arith.constant 0 : index
    %55 = vector.load %arg6[%c0_21, %c0_22, %c0_23] : memref<1x2x256xf32, #tpu.memory_space<vmem>>, vector<1x2x256xf32>
    %56 = vector.shape_cast %55 : vector<1x2x256xf32> to vector<2x256xf32>
    %57 = vector.shape_cast %54 : vector<2x256xf32> to vector<1x2x256xf32>
    tpu.vector_store %arg6[%c0_21, %c0_22, %c0_23], %57 {strides = array<i32>} : memref<1x2x256xf32, #tpu.memory_space<vmem>>, vector<1x2x256xf32>,
    return
  }
  func.func @transform_0(%arg0: i32, %arg1: i32, %arg2: i32) -> (i32, i32, i32) {
    %c1_i32 = arith.constant 1 : i32
    %0 = arith.muli %arg1, %c1_i32 : i32
    %1 = arith.addi %0, %arg2 : i32
    %c0_i32 = arith.constant 0 : i32
    %2 = arith.minsi %1, %c0_i32 : i32
    %c0_i32_0 = arith.constant 0 : i32
    %c0_i32_1 = arith.constant 0 : i32
    return %arg0, %c0_i32_0, %2 : i32, i32, i32
  }
  func.func @transform_1(%arg0: i32, %arg1: i32, %arg2: i32) -> (i32, i32, i32) {
    %c1_i32 = arith.constant 1 : i32
    %0 = arith.muli %arg1, %c1_i32 : i32
    %1 = arith.addi %0, %arg2 : i32
    %c0_i32 = arith.constant 0 : i32
    %2 = arith.minsi %1, %c0_i32 : i32
    %c0_i32_0 = arith.constant 0 : i32
    %c0_i32_1 = arith.constant 0 : i32
    return %arg0, %c0_i32_0, %2 : i32, i32, i32
  }
  func.func @transform_2(%arg0: i32, %arg1: i32, %arg2: i32) -> (i32, i32) {
    %c0_i32 = arith.constant 0 : i32
    %c0_i32_0 = arith.constant 0 : i32
    %c0_i32_1 = arith.constant 0 : i32
    return %c0_i32, %c0_i32_0 : i32, i32
  }
  func.func @transform_3(%arg0: i32, %arg1: i32, %arg2: i32) -> (i32, i32, i32) {
    %c1_i32 = arith.constant 1 : i32
    %0 = arith.muli %arg0, %c1_i32 : i32
    %1 = arith.addi %0, %arg1 : i32
    %c0_i32 = arith.constant 0 : i32
    %c0_i32_0 = arith.constant 0 : i32
    %c0_i32_1 = arith.constant 0 : i32
    return %1, %c0_i32, %c0_i32_0 : i32, i32, i32
  }
}

</mosaic_0001>

<llo_original>
// kernel: seg_cross_entropy_loss.1
$region0: #{seg_cross_entropy_loss.1}
  #allocation0 [shape = 'u32[]', space=smem, size = 0x4, offset = 0x4, fixed_abs, tag = 'smem constant byte address 0x4 - core index']
  #allocation1 [shape = 'u32[144,128]{1,0:T(1,128)}', space=vmem, size = 0x12000, scoped, tag = 'internal scratch']
  %s0 = inlined_call_operand.vmem [shape: f32[2,41,256], index: 0, kind: input, shape index: {}]
  %s1 = inlined_call_operand.vmem [shape: s32[2,1,256], index: 1, kind: input, shape index: {}]
  %s2 = inlined_call_operand.vmem [shape: f32[41,1], index: 2, kind: input, shape index: {}]
  %s3 = inlined_call_operand.vmem [shape: f32[2,2,256], index: 3, kind: output, shape index: {}]
  %s4 = sld [smem:[#allocation0]]
  $region49: #{seg_cross_entropy_loss.1} parent=0
    _
  %s6 = ssub.s32 1, %s4
  %s7 = scalar_select 0, %s6, %s4
  loop: start=0, step=1, limit=4
  $region2: #{seg_cross_entropy_loss.1} parent=0 // loop_pre_header
    _
  $region3: #{seg_cross_entropy_loss.1} parent=0 // loop_header
    %s9 = sphi 0, %s13
    %p10 = scmp.ge.s32.totalorder %s9, 4
    %s16 = sphi 0, %s35
    %s17 = sphi 0, %s31
    %s18 = sphi 0, %s27
    %s19 = sphi 0, %s16
    %s20 = sphi 0, %s17
    %s21 = sphi 0, %s18
    %s22 = sphi 0, %s19
    %s23 = sphi 0, %s20
    %s24 = sphi 0, %s21
    %s46 = sphi 0, %s48
    %s49 = sphi 0, %s46
    %s50 = sphi 0, %s49
    %s66 = sphi 0, %s50
    %s80 = sphi 0, %s82
    %s83 = sphi 0, %s80
    %s84 = sphi 0, %s83
    %s100 = sphi 0, %s84
    %s104 = sphi 0, %s104
    %s106 = sphi 0, %s104
    %s107 = sphi 0, %s106
    %s121 = sphi 0, %s107
    %s129 = sphi 0, %s131
    %s132 = sphi 0, %s129
    %s133 = sphi 0, %s132
    %s149 = sphi 0, %s133
  $region4: #{seg_cross_entropy_loss.1} parent=0 // loop_header_branch
    %12 = sbr.rel (%p10) target = $region8
  $region5: #{seg_cross_entropy_loss.1} parent=0 // loop_body
    %s14 = ssub.s32 %s9, 1
    %s15 = ssub.s32 %s9, 2
    %s25 = sadd.s32 1, %s18
    %p26 = scmp.ge.s32.totalorder %s25, 1
    %s27 = scalar_select %p26, 0, %s25
    %s28 = sadd.s32 1, %s17
    %s29 = scalar_select %p26, %s28, %s17
    %p30 = scmp.ge.s32.totalorder %s29, 1
    %s31 = scalar_select %p30, 0, %s29
    %s32 = sadd.s32 1, %s16
    %s33 = scalar_select %p30, %s32, %s16
    %p34 = scmp.ge.s32.totalorder %s33, 2
    %s35 = scalar_select %p34, 0, %s33
    %s36 = sadd.s32 %s17, %s18
    %p37 = scmp.lt.s32.totalorder %s36, 0
    %s38 = scalar_select %p37, %s36, 0
    %s39 = sadd.s32 %s31, %s27
    %p40 = scmp.lt.s32.totalorder %s39, 0
    %s41 = scalar_select %p40, %s39, 0
    %s42 = ssub.s32 %s16, %s35
    %s43 = ssub.s32 %s38, %s41
    %s44 = sor.u32 %s42, %s43
    %p45 = scmp.eq.s32.totalorder %s44, 0
    %s47 = sadd.s32 %s46, 1
    %s48 = scalar_select %p45, %s46, %s47
    %p51 = pneg %p45
    %p52 = scmp.eq.s32.totalorder %s9, 1
    %p53 = por %p51, %p52
    %p54 = scmp.ne.s32.totalorder %s46, %s49
    %p55 = scmp.eq.s32.totalorder %s9, 0
    %p56 = por %p54, %p55
    %p57 = scmp.ne.s32.totalorder %s46, %s49
    %p58 = scmp.eq.s32.totalorder %s14, 1
    %p59 = por %p57, %p58
    %p60 = scmp.ne.s32.totalorder %s49, %s50
    %p61 = scmp.eq.s32.totalorder %s14, 0
    %p62 = por %p60, %p61
    %p63 = scmp.ne.s32.totalorder %s49, %s50
    %p64 = scmp.eq.s32.totalorder %s15, 1
    %p65 = por %p63, %p64
    %p67 = scmp.ne.s32.totalorder %s50, %s66
    %p68 = scmp.eq.s32.totalorder %s15, 0
    %p69 = por %p67, %p68
    %s70 = sadd.s32 %s17, %s18
    %p71 = scmp.lt.s32.totalorder %s70, 0
    %s72 = scalar_select %p71, %s70, 0
    %s73 = sadd.s32 %s31, %s27
    %p74 = scmp.lt.s32.totalorder %s73, 0
    %s75 = scalar_select %p74, %s73, 0
    %s76 = ssub.s32 %s16, %s35
    %s77 = ssub.s32 %s72, %s75
    %s78 = sor.u32 %s76, %s77
    %p79 = scmp.eq.s32.totalorder %s78, 0
    %s81 = sadd.s32 %s80, 1
    %s82 = scalar_select %p79, %s80, %s81
    %p85 = pneg %p79
    %p86 = scmp.eq.s32.totalorder %s9, 1
    %p87 = por %p85, %p86
    %p88 = scmp.ne.s32.totalorder %s80, %s83
    %p89 = scmp.eq.s32.totalorder %s9, 0
    %p90 = por %p88, %p89
    %p91 = scmp.ne.s32.totalorder %s80, %s83
    %p92 = scmp.eq.s32.totalorder %s14, 1
    %p93 = por %p91, %p92
    %p94 = scmp.ne.s32.totalorder %s83, %s84
    %p95 = scmp.eq.s32.totalorder %s14, 0
    %p96 = por %p94, %p95
    %p97 = scmp.ne.s32.totalorder %s83, %s84
    %p98 = scmp.eq.s32.totalorder %s15, 1
    %p99 = por %p97, %p98
    %p101 = scmp.ne.s32.totalorder %s84, %s100
    %p102 = scmp.eq.s32.totalorder %s15, 0
    %p103 = por %p101, %p102
    %s105 = sadd.s32 %s104, 1
    %p108 = scmp.eq.s32.totalorder %s9, 1
    %p109 = scmp.ne.s32.totalorder %s104, %s106
    %p110 = scmp.eq.s32.totalorder %s9, 0
    %p111 = por %p109, %p110
    %p112 = scmp.ne.s32.totalorder %s104, %s106
    %p113 = scmp.eq.s32.totalorder %s14, 1
    %p114 = por %p112, %p113
    %p115 = scmp.ne.s32.totalorder %s106, %s107
    %p116 = scmp.eq.s32.totalorder %s14, 0
    %p117 = por %p115, %p116
    %p118 = scmp.ne.s32.totalorder %s106, %s107
    %p119 = scmp.eq.s32.totalorder %s15, 1
    %p120 = por %p118, %p119
    %p122 = scmp.ne.s32.totalorder %s107, %s121
    %p123 = scmp.eq.s32.totalorder %s15, 0
    %p124 = por %p122, %p123
    %s125 = sadd.s32 %s16, %s17
    %s126 = sadd.s32 %s35, %s31
    %s127 = ssub.s32 %s125, %s126
    %p128 = scmp.eq.s32.totalorder %s127, 0
    %s130 = sadd.s32 %s129, 1
    %s131 = scalar_select %p128, %s129, %s130
    %p134 = pneg %p128
    %p135 = scmp.eq.s32.totalorder %s9, 1
    %p136 = por %p134, %p135
    %p137 = scmp.ne.s32.totalorder %s129, %s132
    %p138 = scmp.eq.s32.totalorder %s9, 0
    %p139 = por %p137, %p138
    %p140 = scmp.ne.s32.totalorder %s129, %s132
    %p141 = scmp.eq.s32.totalorder %s14, 1
    %p142 = por %p140, %p141
    %p143 = scmp.ne.s32.totalorder %s132, %s133
    %p144 = scmp.eq.s32.totalorder %s14, 0
    %p145 = por %p143, %p144
    %p146 = scmp.ne.s32.totalorder %s132, %s133
    %p147 = scmp.eq.s32.totalorder %s15, 1
    %p148 = por %p146, %p147
    %p150 = scmp.ne.s32.totalorder %s133, %s149
    %p151 = scmp.eq.s32.totalorder %s15, 0
    %p152 = por %p150, %p151
    %p153 = scmp.le.s32.totalorder 1, %s9
    %p154 = scmp.lt.s32.totalorder %s9, 3
    %p155 = pnand %p153, %p154
    %p156 = pneg %p155
    // Predicated region
    $region9: #{seg_cross_entropy_loss.1} parent=5 // pred_check
      _
    $region10: #{seg_cross_entropy_loss.1} parent=5 // pred_check_branch
      %158 = sbr.rel (%p155) target = $region12
    $region11: #{seg_cross_entropy_loss.1} parent=5 // pred_region
      %s159 = ssub.s32 %s9, 1
      // Predicated region
      $region13: #{seg_cross_entropy_loss.1} parent=11 // pred_check
        %p160 = pneg %p117
      $region14: #{seg_cross_entropy_loss.1} parent=11 // pred_check_branch
        %162 = sbr.rel (%p160) target = $region16
      $region15: #{seg_cross_entropy_loss.1} parent=11 // pred_region
        _
      $region16: #{seg_cross_entropy_loss.1} parent=11 // pred_fallthru
        _
    $region12: #{seg_cross_entropy_loss.1} parent=5 // pred_fallthru
      _
    %p163 = scmp.lt.s32.totalorder %s9, 2
    // Predicated region
    $region17: #{seg_cross_entropy_loss.1} parent=5 // pred_check
      %p164 = pneg %p163
    $region18: #{seg_cross_entropy_loss.1} parent=5 // pred_check_branch
      %166 = sbr.rel (%p164) target = $region20
    $region19: #{seg_cross_entropy_loss.1} parent=5 // pred_region
      // Predicated region
      $region21: #{seg_cross_entropy_loss.1} parent=19 // pred_check
        %p167 = pneg %p56
      $region22: #{seg_cross_entropy_loss.1} parent=19 // pred_check_branch
        %169 = sbr.rel (%p167) target = $region24
      $region23: #{seg_cross_entropy_loss.1} parent=19 // pred_region
        %s170 = sadd.s32 %s17, %s18
        %p171 = scmp.lt.s32.totalorder %s170, 0
        %s172 = scalar_select %p171, %s170, 0
        %s173 = smul.u32 2, %s172
        %p174 = scmp.lt.s32.totalorder %s16, 1
        %s175 = scalar_select %p174, %s16, 1
        %p176 = scmp.lt.s32.totalorder %s173, 1
        %s177 = scalar_select %p176, %s173, 1
        %s178 = smul.addr %s175, 12
        %s179 = sadd.s32 %s177, %s178
        %s180 = smul.addr %s179, 8
        %s181 = scalar_lea.vmem %s0, %s180
        %s182 = sadd.s32 %s17, %s18
        %p183 = scmp.lt.s32.totalorder %s182, 0
        %s184 = scalar_select %p183, %s182, 0
        %s185 = smul.u32 2, %s184
      $region24: #{seg_cross_entropy_loss.1} parent=19 // pred_fallthru
        _
      // Predicated region
      $region25: #{seg_cross_entropy_loss.1} parent=19 // pred_check
        %p186 = pneg %p90
      $region26: #{seg_cross_entropy_loss.1} parent=19 // pred_check_branch
        %188 = sbr.rel (%p186) target = $region28
      $region27: #{seg_cross_entropy_loss.1} parent=19 // pred_region
        %s189 = sadd.s32 %s17, %s18
        %p190 = scmp.lt.s32.totalorder %s189, 0
        %s191 = scalar_select %p190, %s189, 0
        %s192 = smul.u32 2, %s191
        %p193 = scmp.lt.s32.totalorder %s16, 1
        %s194 = scalar_select %p193, %s16, 1
        %p195 = scmp.lt.s32.totalorder %s192, 1
        %s196 = scalar_select %p195, %s192, 1
        %s197 = smul.addr %s194, 2
        %s198 = sadd.s32 %s196, %s197
        %s199 = scalar_lea.vmem %s1, %s198
        %s200 = sadd.s32 %s17, %s18
        %p201 = scmp.lt.s32.totalorder %s200, 0
        %s202 = scalar_select %p201, %s200, 0
        %s203 = smul.u32 2, %s202
      $region28: #{seg_cross_entropy_loss.1} parent=19 // pred_fallthru
        _
    $region20: #{seg_cross_entropy_loss.1} parent=5 // pred_fallthru
      _
    %p204 = scmp.le.s32.totalorder 1, %s9
    %p205 = scmp.lt.s32.totalorder %s9, 3
    %p206 = pnand %p204, %p205
    %p207 = pneg %p206
    // Predicated region
    $region29: #{seg_cross_entropy_loss.1} parent=5 // pred_check
      _
    $region30: #{seg_cross_entropy_loss.1} parent=5 // pred_check_branch
      %209 = sbr.rel (%p206) target = $region32
    $region31: #{seg_cross_entropy_loss.1} parent=5 // pred_region
      %s210 = ssub.s32 %s9, 1
      %s211 = sadd.s32 %s20, %s21
      %p212 = scmp.lt.s32.totalorder %s211, 0
      %s213 = scalar_select %p212, %s211, 0
      %s214 = smul.u32 2, %s213
      %p215 = scmp.lt.s32.totalorder %s19, 1
      %s216 = scalar_select %p215, %s19, 1
      %p217 = scmp.lt.s32.totalorder %s214, 1
      %s218 = scalar_select %p217, %s214, 1
      %s219 = smul.addr %s216, 12
      %s220 = sadd.s32 %s218, %s219
      %s221 = smul.addr %s220, 8
      %s222 = scalar_lea.vmem %s0, %s221
      %p223 = pneg %p62
      %p224 = pneg %p59
      %s225 = sadd.s32 %s20, %s21
      %p226 = scmp.lt.s32.totalorder %s225, 0
      %s227 = scalar_select %p226, %s225, 0
      %s228 = smul.u32 2, %s227
      %p229 = scmp.lt.s32.totalorder %s19, 1
      %s230 = scalar_select %p229, %s19, 1
      %p231 = scmp.lt.s32.totalorder %s228, 1
      %s232 = scalar_select %p231, %s228, 1
      %s233 = smul.addr %s230, 2
      %s234 = sadd.s32 %s232, %s233
      %s235 = scalar_lea.vmem %s1, %s234
      %p236 = pneg %p96
      %p237 = pneg %p93
      %p238 = pneg %p117
      %p239 = pneg %p114
      %p240 = pneg %p145
      %p241 = pneg %p142
      %s242 = sadd.s32 %s19, %s20
      %p243 = scmp.lt.s32.totalorder %s242, 1
      %s244 = scalar_select %p243, %s242, 1
      %s245 = smul.addr %s244, 2
      %s246 = smul.addr %s245, 2
      %s247 = scalar_lea.vmem %s3, %s246
      %s248 = sadd.s32 %s20, %s21
      %p249 = scmp.lt.s32.totalorder %s248, 0
      %s250 = scalar_select %p249, %s248, 0
      %s251 = smul.u32 2, %s250
      %p252 = scmp.lt.s32.totalorder %s19, 1
      %s253 = scalar_select %p252, %s19, 1
      %p254 = scmp.lt.s32.totalorder %s251, 1
      %s255 = scalar_select %p254, %s251, 1
      %s256 = smul.addr %s253, 12
      %s257 = sadd.s32 %s255, %s256
      %s258 = smul.addr %s257, 8
      %s259 = scalar_lea.vmem %s0, %s258
      %s260 = sadd.s32 %s20, %s21
      %p261 = scmp.lt.s32.totalorder %s260, 0
      %s262 = scalar_select %p261, %s260, 0
      %s263 = smul.u32 2, %s262
      %s264 = sadd.s32 %s20, %s21
      %p265 = scmp.lt.s32.totalorder %s264, 0
      %s266 = scalar_select %p265, %s264, 0
      %s267 = smul.u32 2, %s266
      %p268 = scmp.lt.s32.totalorder %s19, 1
      %s269 = scalar_select %p268, %s19, 1
      %p270 = scmp.lt.s32.totalorder %s267, 1
      %s271 = scalar_select %p270, %s267, 1
      %s272 = smul.addr %s269, 2
      %s273 = sadd.s32 %s271, %s272
      %s274 = scalar_lea.vmem %s1, %s273
      %s275 = sadd.s32 %s20, %s21
      %p276 = scmp.lt.s32.totalorder %s275, 0
      %s277 = scalar_select %p276, %s275, 0
      %s278 = smul.u32 2, %s277
      %s279 = sadd.s32 %s19, %s20
      %p280 = scmp.lt.s32.totalorder %s279, 1
      %s281 = scalar_select %p280, %s279, 1
      %s282 = smul.addr %s281, 2
      %s283 = smul.addr %s282, 2
      %s284 = scalar_lea.vmem %s3, %s283
      %s285 = sadd.s32 %s19, %s20
      %p286 = scmp.eq.s32.totalorder %s21, 0
      // Predicated region
      $region33: #{seg_cross_entropy_loss.1} parent=31 // pred_check
        %p287 = pneg %p286
      $region34: #{seg_cross_entropy_loss.1} parent=31 // pred_check_branch
        %289 = sbr.rel (%p287) target = $region36
      $region35: #{seg_cross_entropy_loss.1} parent=31 // pred_region
        %290 = vst [vmem:[%s284] sm:$0xf] 0.0
      $region36: #{seg_cross_entropy_loss.1} parent=31 // pred_fallthru
        _
      %v291 = vld [vmem:[%s259] sm:$0xff]
      %v292 = vld [vmem:[%s259 + $0x8] sm:$0xff]
      %v293 = vld [vmem:[%s259 + $0x10] sm:$0xff]
      %v294 = vld [vmem:[%s259 + $0x18] sm:$0xff]
      %v295 = vld [vmem:[%s259 + $0x20] sm:$0xff]
      %v296 = vld [vmem:[%s259 + $0x28] sm:$0xff]
      %v297 = vld [vmem:[%s259 + $0x30] sm:$0xff]
      %v298 = vld [vmem:[%s259 + $0x38] sm:$0xff]
      %v299 = vld [vmem:[%s259 + $0x40] sm:$0xff]
      %v300 = vld [vmem:[%s259 + $0x48] sm:$0xff]
      %v301 = vld [vmem:[%s259 + $0x50] sm:$0x1]
      %v302 = vld [vmem:[%s259 + $0x58] sm:$0x1]
      %v303 = vld [vmem:[%s274] sm:$0x3]
      %v304 = vld [vmem:[%s2] sm:$0xff]
      %v305 = vld [vmem:[%s2 + $0x8] sm:$0xff]
      %v306 = vld [vmem:[%s2 + $0x10] sm:$0xff]
      %v307 = vld [vmem:[%s2 + $0x18] sm:$0xff]
      %v308 = vld [vmem:[%s2 + $0x20] sm:$0xff]
      %v309 = vld [vmem:[%s2 + $0x28] sm:$0x1]
      %v310 = vmax.f32 %v291, %v295
      %v311 = vmax.f32 %v293, %v297
      %v312 = vmax.f32 %v310, %v299
      %vm313 = vcmask 1040384
      %v314 = vsel %vm313, %v301, -inf
      %v315 = vmax.f32 %v311, %v314
      %v316 = vmax.f32 %v312, %v315
      %v317 = vrot.slane %v316, 4
      %v318 = vmax.f32 %v316, %v317
      %v319 = vrot.slane %v318, 2
      %v320 = vmax.f32 %v318, %v319
      %v321 = vrot.slane %v320, 1
      %v322 = vmax.f32 %v320, %v321
      %v323 = vmax.f32 %v292, %v296
      %v324 = vmax.f32 %v294, %v298
      %v325 = vmax.f32 %v323, %v300
      %v326 = vsel %vm313, %v302, -inf
      %v327 = vmax.f32 %v324, %v326
      %v328 = vmax.f32 %v325, %v327
      %v329 = vrot.slane %v328, 4
      %v330 = vmax.f32 %v328, %v329
      %v331 = vrot.slane %v330, 2
      %v332 = vmax.f32 %v330, %v331
      %v333 = vrot.slane %v332, 1
      %v334 = vmax.f32 %v332, %v333
      %v335 = vsub.f32 %v291, %v322
      %v336 = vsub.f32 %v292, %v334
      %v337 = vsub.f32 %v293, %v322
      %v338 = vsub.f32 %v294, %v334
      %v339 = vsub.f32 %v295, %v322
      %v340 = vsub.f32 %v296, %v334
      %v341 = vsub.f32 %v297, %v322
      %v342 = vsub.f32 %v298, %v334
      %v343 = vsub.f32 %v299, %v322
      %v344 = vsub.f32 %v300, %v334
      %v345 = vsub.f32 %v301, %v322
      %v346 = vsub.f32 %v302, %v334
      %v347 = vmul.f32 %v335, 1.442695
      %v348 = vpow.pop %v347
      %v349 = vmul.f32 %v336, 1.442695
      %v350 = vpow.pop %v349
      %v351 = vmul.f32 %v337, 1.442695
      %v352 = vpow.pop %v351
      %v353 = vmul.f32 %v338, 1.442695
      %v354 = vpow.pop %v353
      %v355 = vmul.f32 %v339, 1.442695
      %v356 = vpow.pop %v355
      %v357 = vmul.f32 %v340, 1.442695
      %v358 = vpow.pop %v357
      %v359 = vmul.f32 %v341, 1.442695
      %v360 = vpow.pop %v359
      %v361 = vmul.f32 %v342, 1.442695
      %v362 = vpow.pop %v361
      %v363 = vmul.f32 %v343, 1.442695
      %v364 = vpow.pop %v363
      %v365 = vmul.f32 %v344, 1.442695
      %v366 = vpow.pop %v365
      %v367 = vmul.f32 %v345, 1.442695
      %v368 = vpow.pop %v367
      %v369 = vmul.f32 %v346, 1.442695
      %v370 = vpow.pop %v369
      %v371 = vadd.f32 %v348, %v352
      %v372 = vadd.f32 %v371, %v356
      %v373 = vadd.f32 %v372, %v360
      %v374 = vadd.f32 %v373, %v364
      %v375 = vsel %vm313, %v368, 0.0
      %v376 = vadd.f32 %v374, %v375
      %v377 = vrot.slane %v376, 4
      %v378 = vadd.f32 %v376, %v377
      %v379 = vrot.slane %v378, 2
      %v380 = vadd.f32 %v378, %v379
      %v381 = vrot.slane %v380, 1
      %v382 = vadd.f32 %v380, %v381
      %v383 = vadd.f32 %v350, %v354
      %v384 = vadd.f32 %v383, %v358
      %v385 = vadd.f32 %v384, %v362
      %v386 = vadd.f32 %v385, %v366
      %v387 = vsel %vm313, %v370, 0.0
      %v388 = vadd.f32 %v386, %v387
      %v389 = vrot.slane %v388, 4
      %v390 = vadd.f32 %v388, %v389
      %v391 = vrot.slane %v390, 2
      %v392 = vadd.f32 %v390, %v391
      %v393 = vrot.slane %v392, 1
      %v394 = vadd.f32 %v392, %v393
      %v395 = vlog2.pop %v382
      %v396 = vmul.f32 %v395, 0.6931472
      %v397 = vlog2.pop %v394
      %v398 = vmul.f32 %v397, 0.6931472
      %v399 = vadd.f32 %v322, %v396
      %v400 = vadd.f32 %v334, %v398
      %v401 = vlaneseq
      %v402 = vshrl.u32 %v401, 7
      %v403 = vadd.s32 %v402, 8
      %v404 = vadd.s32 %v402, 16
      %v405 = vadd.s32 %v402, 24
      %v406 = vadd.s32 %v402, 32
      %v407 = vadd.s32 %v402, 40
      %v408 = vlaneseq
      %v409 = vshrl.u32 %v408, 7
      %v410 = vsub.s32 0, %v409
      %v411 = vrot.slane %v303, %v410
      %v412 = vlaneseq
      %v413 = vshrl.u32 %v412, 7
      %v414 = vsub.s32 1, %v413
      %v415 = vrot.slane %v303, %v414
      %vm416 = vcmp.eq.s32.totalorder %v402, %v411
      %vm417 = vcmp.eq.s32.totalorder %v402, %v415
      %vm418 = vcmp.eq.s32.totalorder %v403, %v411
      %vm419 = vcmp.eq.s32.totalorder %v403, %v415
      %vm420 = vcmp.eq.s32.totalorder %v404, %v411
      %vm421 = vcmp.eq.s32.totalorder %v404, %v415
      %vm422 = vcmp.eq.s32.totalorder %v405, %v411
      %vm423 = vcmp.eq.s32.totalorder %v405, %v415
      %vm424 = vcmp.eq.s32.totalorder %v406, %v411
      %vm425 = vcmp.eq.s32.totalorder %v406, %v415
      %vm426 = vcmp.eq.s32.totalorder %v407, %v411
      %vm427 = vcmp.eq.s32.totalorder %v407, %v415
      %v428 = vsel %vm416, %v291, 0.0
      %v429 = vsel %vm417, %v292, 0.0
      %v430 = vsel %vm418, %v293, 0.0
      %v431 = vsel %vm419, %v294, 0.0
      %v432 = vsel %vm420, %v295, 0.0
      %v433 = vsel %vm421, %v296, 0.0
      %v434 = vsel %vm422, %v297, 0.0
      %v435 = vsel %vm423, %v298, 0.0
      %v436 = vsel %vm424, %v299, 0.0
      %v437 = vsel %vm425, %v300, 0.0
      %v438 = vsel %vm426, %v301, 0.0
      %v439 = vsel %vm427, %v302, 0.0
      %v440 = vadd.f32 %v428, %v430
      %v441 = vadd.f32 %v440, %v432
      %v442 = vadd.f32 %v441, %v434
      %v443 = vadd.f32 %v442, %v436
      %v444 = vsel %vm313, %v438, 0.0
      %v445 = vadd.f32 %v443, %v444
      %v446 = vrot.slane %v445, 4
      %v447 = vadd.f32 %v445, %v446
      %v448 = vrot.slane %v447, 2
      %v449 = vadd.f32 %v447, %v448
      %v450 = vrot.slane %v449, 1
      %v451 = vadd.f32 %v449, %v450
      %v452 = vadd.f32 %v429, %v431
      %v453 = vadd.f32 %v452, %v433
      %v454 = vadd.f32 %v453, %v435
      %v455 = vadd.f32 %v454, %v437
      %v456 = vsel %vm313, %v439, 0.0
      %v457 = vadd.f32 %v455, %v456
      %v458 = vrot.slane %v457, 4
      %v459 = vadd.f32 %v457, %v458
      %v460 = vrot.slane %v459, 2
      %v461 = vadd.f32 %v459, %v460
      %v462 = vrot.slane %v461, 1
      %v463 = vadd.f32 %v461, %v462
      %465 = vset.pattern.permute.xlu0 0
      %466 = vperm.xlu0 %465, %v304
      %v467 = vpop.permute.xlu0 %466
      %470 = vset.pattern.permute.xlu0 0
      %471 = vperm.xlu0 %470, %v305
      %v472 = vpop.permute.xlu0 %471
      %475 = vset.pattern.permute.xlu0 0
      %476 = vperm.xlu0 %475, %v306
      %v477 = vpop.permute.xlu0 %476
      %480 = vset.pattern.permute.xlu0 0
      %481 = vperm.xlu0 %480, %v307
      %v482 = vpop.permute.xlu0 %481
      %485 = vset.pattern.permute.xlu0 0
      %486 = vperm.xlu0 %485, %v308
      %v487 = vpop.permute.xlu0 %486
      %490 = vset.pattern.permute.xlu0 0
      %491 = vperm.xlu0 %490, %v309
      %v492 = vpop.permute.xlu0 %491
      %v494 = vsel %vm416, %v467, 0.0
      %v495 = vsel %vm417, %v467, 0.0
      %v496 = vsel %vm418, %v472, 0.0
      %v497 = vsel %vm419, %v472, 0.0
      %v498 = vsel %vm420, %v477, 0.0
      %v499 = vsel %vm421, %v477, 0.0
      %v500 = vsel %vm422, %v482, 0.0
      %v501 = vsel %vm423, %v482, 0.0
      %v502 = vsel %vm424, %v487, 0.0
      %v503 = vsel %vm425, %v487, 0.0
      %v504 = vsel %vm426, %v492, 0.0
      %v505 = vsel %vm427, %v492, 0.0
      %v506 = vadd.f32 %v494, %v496
      %v507 = vadd.f32 %v506, %v498
      %v508 = vadd.f32 %v507, %v500
      %v509 = vadd.f32 %v508, %v502
      %v510 = vsel %vm313, %v504, 0.0
      %v511 = vadd.f32 %v509, %v510
      %v512 = vrot.slane %v511, 4
      %v513 = vadd.f32 %v511, %v512
      %v514 = vrot.slane %v513, 2
      %v515 = vadd.f32 %v513, %v514
      %v516 = vrot.slane %v515, 1
      %v517 = vadd.f32 %v515, %v516
      %v518 = vadd.f32 %v495, %v497
      %v519 = vadd.f32 %v518, %v499
      %v520 = vadd.f32 %v519, %v501
      %v521 = vadd.f32 %v520, %v503
      %v522 = vsel %vm313, %v505, 0.0
      %v523 = vadd.f32 %v521, %v522
      %v524 = vrot.slane %v523, 4
      %v525 = vadd.f32 %v523, %v524
      %v526 = vrot.slane %v525, 2
      %v527 = vadd.f32 %v525, %v526
      %v528 = vrot.slane %v527, 1
      %v529 = vadd.f32 %v527, %v528
      %s530 = sadd.s32 %s20, %s21
      %p531 = scmp.lt.s32.totalorder %s530, 0
      %s532 = scalar_select %p531, %s530, 0
      %v533 = vlaneseq
      %v534 = vand.u32 %v533, 127
      %v535 = vadd.s32 %v534, 128
      %s536 = smul.u32 %s532, 256
      %v537 = vstv %s536
      %v538 = vadd.s32 %v537, %v534
      %v539 = vadd.s32 %v537, %v535
      %vm540 = vcmp.lt.s32.totalorder %v538, 256
      %vm541 = vcmp.lt.s32.totalorder %v539, 256
      %p542 = scmp.lt.s32.totalorder %s530, 1
      %s543 = scalar_select %p542, 1, 0
      %v544 = vstv %s543
      %vm545 = vcmp.eq.s32.totalorder %v544, 1
      %vm546 = vmand %vm540, %vm545
      %vm547 = vmand %vm541, %vm545
      %vm548 = vcmp.ne.s32.totalorder %v303, 255
      %v549 = vsel %vm548, 1, 0
      %v550 = vlaneseq
      %v551 = vshrl.u32 %v550, 7
      %v552 = vsub.s32 0, %v551
      %v553 = vrot.slane %v549, %v552
      %v554 = vlaneseq
      %v555 = vshrl.u32 %v554, 7
      %v556 = vsub.s32 1, %v555
      %v557 = vrot.slane %v549, %v556
      %vm558 = vcmp.ne.s32.totalorder %v553, 0
      %vm559 = vcmp.ne.s32.totalorder %v557, 0
      %vm560 = vmand %vm546, %vm558
      %vm561 = vmand %vm547, %vm559
      %v562 = vsub.f32 %v399, %v451
      %v563 = vsub.f32 %v400, %v463
      %v564 = vmul.f32 %v517, %v562
      %v565 = vmul.f32 %v529, %v563
      %v566 = vsel %vm560, %v564, 0.0
      %v567 = vsel %vm561, %v565, 0.0
      %v568 = vsel %vm560, %v517, 0.0
      %v569 = vsel %vm561, %v529, 0.0
      %v570 = vld [vmem:[%s284] sm:$0xf]
      %v573 = vrot.slane %v568, 7
      %v574 = vrot.slane %v569, 7
      %v577 = vsel %vm313, %v566, %v573
      %v578 = vsel %vm313, %v567, %v574
      %v581 = vcombine.low %v577, %v578
      %v583 = vunpack.c.l.s4 1983009808
      %v584 = vunpack.c.0.s8 %v583
      %v585 = vlaneseq
      %v586 = vshrl.u32 %v585, 7
      %v587 = vsub.s32 %v584, %v586
      %v588 = vrot.slane %v581, %v587
      %v590 = vadd.f32 %v570, %v588
      %591 = vst [vmem:[%s284] sm:$0xf] %v590
      %s592 = sadd.s32 %s19, %s20
      %p593 = scmp.lt.s32.totalorder %s592, 1
      %s594 = scalar_select %p593, %s592, 1
      %s595 = smul.addr %s594, 2
      %s596 = smul.addr %s595, 2
      %s597 = scalar_lea.vmem %s3, %s596
      // Predicated region
      $region37: #{seg_cross_entropy_loss.1} parent=31 // pred_check
        %p598 = pneg %p142
      $region38: #{seg_cross_entropy_loss.1} parent=31 // pred_check_branch
        %600 = sbr.rel (%p598) target = $region40
      $region39: #{seg_cross_entropy_loss.1} parent=31 // pred_region
        %s601 = sadd.s32 %s19, %s20
      $region40: #{seg_cross_entropy_loss.1} parent=31 // pred_fallthru
        _
    $region32: #{seg_cross_entropy_loss.1} parent=5 // pred_fallthru
      _
    %p602 = scmp.le.s32.totalorder 2, %s9
    // Predicated region
    $region41: #{seg_cross_entropy_loss.1} parent=5 // pred_check
      %p603 = pneg %p602
    $region42: #{seg_cross_entropy_loss.1} parent=5 // pred_check_branch
      %605 = sbr.rel (%p603) target = $region44
    $region43: #{seg_cross_entropy_loss.1} parent=5 // pred_region
      %s606 = ssub.s32 %s9, 2
      // Predicated region
      $region45: #{seg_cross_entropy_loss.1} parent=43 // pred_check
        %p607 = pneg %p148
      $region46: #{seg_cross_entropy_loss.1} parent=43 // pred_check_branch
        %609 = sbr.rel (%p607) target = $region48
      $region47: #{seg_cross_entropy_loss.1} parent=43 // pred_region
        %s610 = sadd.s32 %s22, %s23
        %p611 = scmp.lt.s32.totalorder %s610, 1
        %s612 = scalar_select %p611, %s610, 1
        %s613 = smul.addr %s612, 2
        %s614 = smul.addr %s613, 2
        %s615 = scalar_lea.vmem %s3, %s614
      $region48: #{seg_cross_entropy_loss.1} parent=43 // pred_fallthru
        _
    $region44: #{seg_cross_entropy_loss.1} parent=5 // pred_fallthru
      _
  $region6: #{seg_cross_entropy_loss.1} parent=0 // loop_footer
    %s13 = sadd.s32 1, %s9
  $region7: #{seg_cross_entropy_loss.1} parent=0 // loop_footer_branch
    %8 = sbr.rel target = $region3
  $region8: #{seg_cross_entropy_loss.1} parent=0 // loop_exit
    _

</llo_original>
